<compile_context>
chip_gen: v6e
topology: v6e:2x2x1
jax: 0.10.0
libtpu: 0.0.40
codegen_flags: <defaults>
</compile_context>

<pallas_src>
import math

import jax
import jax.numpy as jnp
from jax.experimental import pallas as pl
from jax.experimental.pallas import tpu as pltpu


def _build_sinusoidal_pe(dim: int, max_len: int = 1024) -> jnp.ndarray:
    """Deterministic buffer setup, identical to the PyTorch __init__ (f32)."""
    position = jnp.arange(0, max_len, dtype=jnp.float32)[:, None]          # (max_len, 1)
    div_term = jnp.exp(
        jnp.arange(0, dim, 2, dtype=jnp.float32) * -(math.log(10000.0) / dim)
    )                                                                      # (dim/2,)
    pe = jnp.zeros((max_len, dim), dtype=jnp.float32)
    pe = pe.at[:, 0::2].set(jnp.sin(position * div_term))
    pe = pe.at[:, 1::2].set(jnp.cos(position * div_term))
    return pe[None, :, :]                                                  # (1, max_len, dim)


def _add_pe_kernel(x_ref, pe_ref, o_ref):
    # x_ref / o_ref: (Bblk, TR, W) block;  pe_ref: (1, TR, W) block
    # (broadcast over the batch dim inside the block).
    # Keep the f32-upcast add: the kernel is DMA-bound, the VPU casts are free,
    # and this matches PyTorch's f32 promotion against the f32 pe buffer.
    x = x_ref[...].astype(jnp.float32)
    pe = pe_ref[...].astype(jnp.float32)
    o_ref[...] = (x + pe).astype(o_ref.dtype)


def sinusoidal_positional_embedding(
    x: jnp.ndarray,
    pe: jnp.ndarray,
    *,
    target_tile_bytes: int = 1 << 20,   # x-tile bytes; double-buffered total ~8x (bf16 x, f32 pe)
    donate_x: bool = False,
) -> jnp.ndarray:
    """x: (B, S, D) float32/bf16; pe: (1, max_len, D) float32."""
    B, S, D = x.shape
    _, max_len, pe_d = pe.shape
    if pe_d != D:
        raise ValueError(f"pe embedding dim {pe_d} != x embedding dim {D}")
    if S > max_len:
        raise ValueError(f"sequence length {S} exceeds positional-table max_len {max_len}")

    itemsize = jnp.dtype(x.dtype).itemsize
    sub_mult = {4: 8, 2: 16, 1: 32}.get(itemsize, 8)   # packed sublane multiple for x dtype

    # ---- lane-dense view: fold (S, D) -> (rows, 128) when possible ----------
    if (S * D) % 128 == 0:
        width = 128
        rows = (S * D) // 128
        x_view = x.reshape(B, rows, width)                       # contiguous -> bitcast
        if (max_len * D) % 128 == 0:
            pe_view = pe.reshape(1, (max_len * D) // 128, width)  # full table; rows via index_map
        else:
            pe_view = pe[:, :S, :].reshape(1, rows, width)
    else:
        # Fallback (rare): keep (S, D) layout; full pe table, rows via index_map.
        # NOTE: if D were both non-128-aligned and very wide, an extra D-tiling
        # grid axis would be needed to bound the block size; not required for
        # the shapes this module targets.
        width = D
        rows = S
        x_view = x
        pe_view = pe

    # ---- batch folding for small B ------------------------------------------
    fold_batch = B <= 8
    b_block = B if fold_batch else 1

    # ---- row-tile size -------------------------------------------------------
    tr = max(1, target_tile_bytes // max(1, width * itemsize * b_block))
    tr = min(tr, rows)
    if rows >= sub_mult:
        tr = max(sub_mult, (tr // sub_mult) * sub_mult)
        # v7x has 2 TensorCores: with a single-batch call make sure the
        # parallel row axis has >= 2 grid steps so the second core is used.
        if B == 1 and rows >= 2 * sub_mult:
            half = -(-((rows + 1) // 2) // sub_mult) * sub_mult   # ceil(rows/2) rounded up
            tr = min(tr, half)
    else:
        tr = rows            # tiny input: single full-extent block

    if tr % 8 != 0:
        # Single full-rows block that is not sublane-aligned: the pe block must
        # equal pe_view's full row extent for the BlockSpec constraint to hold.
        pe_view = pe_view[:, :rows, :]

    num_r_tiles = pl.cdiv(rows, tr)

    # ---- grid / specs --------------------------------------------------------
    if fold_batch:
        grid = (num_r_tiles,)
        x_spec = pl.BlockSpec((b_block, tr, width), lambda r: (0, r, 0))
        pe_spec = pl.BlockSpec((1, tr, width), lambda r: (0, r, 0))
        out_spec = pl.BlockSpec((b_block, tr, width), lambda r: (0, r, 0))
        dim_sem = ("parallel",)
    else:
        # Batch innermost -> pe block index is constant across the batch sweep.
        grid = (num_r_tiles, B)
        x_spec = pl.BlockSpec((1, tr, width), lambda r, b: (b, r, 0))
        pe_spec = pl.BlockSpec((1, tr, width), lambda r, b: (0, r, 0))
        out_spec = pl.BlockSpec((1, tr, width), lambda r, b: (b, r, 0))
        dim_sem = ("parallel", "parallel")

    cost = pl.CostEstimate(
        flops=B * S * D,
        transcendentals=0,
        bytes_accessed=2 * B * S * D * itemsize + S * D * 4,
    )

    extra_kwargs = {}
    if donate_x:
        # Alias x with the output (in-place add). Only enable when x is
        # donatable (e.g. an intermediate inside jit); otherwise XLA copies.
        extra_kwargs["input_output_aliases"] = {0: 0}

    out = pl.pallas_call(
        _add_pe_kernel,
        out_shape=jax.ShapeDtypeStruct((B, rows, width), x.dtype),
        grid_spec=pltpu.PrefetchScalarGridSpec(
            num_scalar_prefetch=0,
            grid=grid,
            in_specs=[x_spec, pe_spec],
            out_specs=out_spec,
        ),
        compiler_params=pltpu.CompilerParams(dimension_semantics=dim_sem),
        cost_estimate=cost,
        **extra_kwargs,
    )(x_view, pe_view)

    return out.reshape(B, S, D)


if __name__ == "__main__":
    key = jax.random.PRNGKey(0)
    MAX_LEN = 1024

    # ---- main check (module-implied small shapes; D=32 exercises the
    #      lane-dense (rows=2, width=128) reformat + batch folding) ----
    B, S, D = 2, 8, 32
    x = jax.random.normal(key, (B, S, D), dtype=jnp.float32)
    pe = _build_sinusoidal_pe(D, MAX_LEN)
    out = jax.block_until_ready(sinusoidal_positional_embedding(x, pe))
    ref = x + pe[:, :S, :]
    assert out.shape == (B, S, D)
    assert jnp.allclose(out, ref, atol=1e-6, rtol=1e-6), "mismatch vs reference"

    # ---- multi-tile lane-dense path with a partial edge block ----
    B2, S2, D2 = 2, 20, 128
    x2 = jax.random.normal(jax.random.PRNGKey(1), (B2, S2, D2), dtype=jnp.float32)
    pe2 = _build_sinusoidal_pe(D2, MAX_LEN)
    out2 = jax.block_until_ready(
        sinusoidal_positional_embedding(x2, pe2, target_tile_bytes=4096)  # force TR=8, 3 tiles
    )
    ref2 = x2 + pe2[:, :S2, :]
    assert jnp.allclose(out2, ref2, atol=1e-6, rtol=1e-6), "tiled-path mismatch"

    # ---- non-lane-dense fallback path (S*D not a multiple of 128) ----
    B3, S3, D3 = 2, 16, 36
    x3 = jax.random.normal(jax.random.PRNGKey(2), (B3, S3, D3), dtype=jnp.float32)
    pe3 = _build_sinusoidal_pe(D3, MAX_LEN)
    out3 = jax.block_until_ready(sinusoidal_positional_embedding(x3, pe3))
    ref3 = x3 + pe3[:, :S3, :]
    assert jnp.allclose(out3, ref3, atol=1e-6, rtol=1e-6), "fallback-path mismatch"

    # ---- bf16 activations, B=1 (exercises sublane multiple 16 and the
    #      B==1 row split for v7x's second TensorCore) ----
    B4, S4, D4 = 1, 64, 64
    x4 = jax.random.normal(jax.random.PRNGKey(3), (B4, S4, D4), dtype=jnp.bfloat16)
    pe4 = _build_sinusoidal_pe(D4, MAX_LEN)
    out4 = jax.block_until_ready(sinusoidal_positional_embedding(x4, pe4))
    ref4 = (x4.astype(jnp.float32) + pe4[:, :S4, :]).astype(jnp.bfloat16)
    assert out4.dtype == jnp.bfloat16
    assert jnp.allclose(out4.astype(jnp.float32), ref4.astype(jnp.float32),
                        atol=1e-2, rtol=1e-2), "bf16-path mismatch"

    print("KERNEL_OK")
</pallas_src>

<mosaic_0001>
module attributes {stable_mosaic.version = 11 : i64} {
  func.func @_add_pe_kernel(%arg0: i32, %arg1: memref<2x2x128xf32, #tpu.memory_space<vmem>>, %arg2: memref<1x2x128xf32, #tpu.memory_space<vmem>>, %arg3: memref<2x2x128xf32, #tpu.memory_space<vmem>>) attributes {dimension_semantics = [#tpu.dimension_semantics<parallel>], iteration_bounds = array<i64: 1>, scalar_prefetch = 0 : i64, scratch_operands = 0 : i64, tpu.core_type = #tpu.core_type<tc>, window_params = [{transform_indices = @transform_0, window_bounds = array<i64: 2, 2, 128>}, {transform_indices = @transform_1, window_bounds = array<i64: 1, 2, 128>}, {transform_indices = @transform_2, window_bounds = array<i64: 2, 2, 128>}]} {
    %c0 = arith.constant 0 : index
    %c0_0 = arith.constant 0 : index
    %c0_1 = arith.constant 0 : index
    %0 = vector.load %arg1[%c0, %c0_0, %c0_1] : memref<2x2x128xf32, #tpu.memory_space<vmem>>, vector<2x2x128xf32>
    %c0_2 = arith.constant 0 : index
    %c0_3 = arith.constant 0 : index
    %c0_4 = arith.constant 0 : index
    %1 = vector.load %arg2[%c0_2, %c0_3, %c0_4] : memref<1x2x128xf32, #tpu.memory_space<vmem>>, vector<1x2x128xf32>
    %2 = vector.broadcast %1 : vector<1x2x128xf32> to vector<2x2x128xf32>
    %3 = arith.addf %0, %2 : vector<2x2x128xf32>
    %c0_5 = arith.constant 0 : index
    %c0_6 = arith.constant 0 : index
    %c0_7 = arith.constant 0 : index
    %4 = vector.load %arg3[%c0_5, %c0_6, %c0_7] : memref<2x2x128xf32, #tpu.memory_space<vmem>>, vector<2x2x128xf32>
    tpu.vector_store %arg3[%c0_5, %c0_6, %c0_7], %3 {strides = array<i32>} : memref<2x2x128xf32, #tpu.memory_space<vmem>>, vector<2x2x128xf32>,
    return
  }
  func.func @transform_0(%arg0: i32) -> (i32, i32, i32) {
    %c0_i32 = arith.constant 0 : i32
    %c0_i32_0 = arith.constant 0 : i32
    %c0_i32_1 = arith.constant 0 : i32
    return %c0_i32, %arg0, %c0_i32_0 : i32, i32, i32
  }
  func.func @transform_1(%arg0: i32) -> (i32, i32, i32) {
    %c0_i32 = arith.constant 0 : i32
    %c0_i32_0 = arith.constant 0 : i32
    %c0_i32_1 = arith.constant 0 : i32
    return %c0_i32, %arg0, %c0_i32_0 : i32, i32, i32
  }
  func.func @transform_2(%arg0: i32) -> (i32, i32, i32) {
    %c0_i32 = arith.constant 0 : i32
    %c0_i32_0 = arith.constant 0 : i32
    %c0_i32_1 = arith.constant 0 : i32
    return %c0_i32, %arg0, %c0_i32_0 : i32, i32, i32
  }
}

</mosaic_0001>

<llo_original>
// kernel: tpu_custom_call.1
$region0: #{tpu_custom_call.1}
  #allocation0 [shape = 'u32[]', space=smem, size = 0x4, offset = 0x4, fixed_abs, tag = 'smem constant byte address 0x4 - core index']
  #allocation1 [shape = 'u32[144,128]{1,0:T(1,128)}', space=vmem, size = 0x12000, scoped, tag = 'internal scratch']
  %s0 = inlined_call_operand.hbm [shape: f32[2,2,128], index: 0, kind: input, shape index: {}]
  %s1 = inlined_call_operand.hbm [shape: f32[1,2,128], index: 1, kind: input, shape index: {}]
  %s2 = inlined_call_operand.hbm [shape: f32[2,2,128], index: 2, kind: output, shape index: {}]
  %s3 = sld [smem:[#allocation0]]
  $region26: #{tpu_custom_call.1} parent=0
    _
  %s5 = ssub.s32 1, %s3
  %s6 = scalar_select 0, %s5, %s3
  $region1: #{tpu_custom_call.1} parent=0
    #allocation2 [shape = 'u8[2048]{0}', space=vmem, size = 0x800, scoped, tag = 'input window, operand 0, single buffered']
    #allocation3 [shape = 's32[1]{0}', space=sflag, size = 0x4, scoped, tag = 'scoped memory for tpu_custom_call.1']
    #allocation4 [shape = 's32[1]{0}', space=sflag, size = 0x4, scoped, tag = 'scoped memory for tpu_custom_call.1']
    #allocation5 [shape = 'u8[1024]{0}', space=vmem, size = 0x400, scoped, tag = 'input window, operand 1, single buffered']
    #allocation6 [shape = 's32[1]{0}', space=sflag, size = 0x4, scoped, tag = 'scoped memory for tpu_custom_call.1']
    #allocation7 [shape = 'u8[2048]{0}', space=vmem, size = 0x800, scoped, tag = 'output window, operand 0, single buffered']
    %7 = vsyncpa [#allocation3], 0
    %8 = vsyncpa [#allocation6], 0
    %9 = vsyncpa [#allocation4], 0
    // Predicated region
    $region2: #{tpu_custom_call.1} parent=1 // pred_check
      _
    $region3: #{tpu_custom_call.1} parent=1 // pred_check_branch
      %11 = sbr.rel (0) target = $region5
    $region4: #{tpu_custom_call.1} parent=1 // pred_region
      %s13 = ssub.s32 64, 64
      %14 = vsyncadd [#allocation3], %s13
      %s15 = sshll.u32 [#allocation2], 4
      %s16 = int_to_ptr.vmem [resolvable:$true] %s15
      %21 = dma.hbm_to_vmem [thread:$0]  %s0, 64, %s16, [#allocation3], 32, 32, 2
    $region5: #{tpu_custom_call.1} parent=1 // pred_fallthru
      _
    // Predicated region
    $region6: #{tpu_custom_call.1} parent=1 // pred_check
      _
    $region7: #{tpu_custom_call.1} parent=1 // pred_check_branch
      %23 = sbr.rel (0) target = $region9
    $region8: #{tpu_custom_call.1} parent=1 // pred_region
      %s25 = ssub.s32 32, 32
      %26 = vsyncadd [#allocation6], %s25
      %s28 = sshll.u32 [#allocation5], 4
      %s29 = int_to_ptr.vmem [resolvable:$true] %s28
      %31 = dma.hbm_to_vmem [thread:$0]  %s1, 32, %s29, [#allocation6]
    $region9: #{tpu_custom_call.1} parent=1 // pred_fallthru
      _
    // Predicated region
    $region10: #{tpu_custom_call.1} parent=1 // pred_check
      _
    $region11: #{tpu_custom_call.1} parent=1 // pred_check_branch
      %33 = sbr.rel (0) target = $region13
    $region12: #{tpu_custom_call.1} parent=1 // pred_region
      %34 = dma.done [#allocation3], 64
    $region13: #{tpu_custom_call.1} parent=1 // pred_fallthru
      _
    // Predicated region
    $region14: #{tpu_custom_call.1} parent=1 // pred_check
      _
    $region15: #{tpu_custom_call.1} parent=1 // pred_check_branch
      %36 = sbr.rel (0) target = $region17
    $region16: #{tpu_custom_call.1} parent=1 // pred_region
      %37 = dma.done [#allocation6], 32
    $region17: #{tpu_custom_call.1} parent=1 // pred_fallthru
      _
    %v38 = vld [vmem:[#allocation2] sm:$0x3]
    %v39 = vld [vmem:[#allocation2 + $0x2] sm:$0x3]
    %v40 = vld [vmem:[#allocation5] sm:$0x3]
    %v41 = vadd.f32 %v38, %v40
    %v42 = vadd.f32 %v39, %v40
    %43 = vst [vmem:[#allocation7] sm:$0x3] %v41
    %44 = vst [vmem:[#allocation7 + $0x2] sm:$0x3] %v42
    // Predicated region
    $region18: #{tpu_custom_call.1} parent=1 // pred_check
      _
    $region19: #{tpu_custom_call.1} parent=1 // pred_check_branch
      %46 = sbr.rel (0) target = $region21
    $region20: #{tpu_custom_call.1} parent=1 // pred_region
      %s48 = ssub.s32 64, 64
      %49 = vsyncadd [#allocation4], %s48
      %s50 = sshll.u32 [#allocation7], 4
      %s51 = int_to_ptr.vmem [resolvable:$true] %s50
      %56 = dma.vmem_to_hbm [thread:$0]  %s51, 64, %s2, [#allocation4], 32, 32, 2
    $region21: #{tpu_custom_call.1} parent=1 // pred_fallthru
      _
    // Predicated region
    $region22: #{tpu_custom_call.1} parent=1 // pred_check
      _
    $region23: #{tpu_custom_call.1} parent=1 // pred_check_branch
      %58 = sbr.rel (0) target = $region25
    $region24: #{tpu_custom_call.1} parent=1 // pred_region
      %59 = dma.done [#allocation4], 64
    $region25: #{tpu_custom_call.1} parent=1 // pred_fallthru
      _
    %60 = vsyncpa [#allocation3], 1
    %61 = vsyncpa [#allocation6], 1
    %62 = vsyncpa [#allocation4], 1

</llo_original>
